<compile_context>
chip_gen: v7x
topology: tpu7x:2x2x1
jax: 0.10.0
libtpu: 0.0.40
codegen_flags: <defaults>
</compile_context>

<pallas_src>
import functools

import jax
import jax.numpy as jnp
from jax.experimental import pallas as pl
from jax.experimental.pallas import tpu as pltpu


def _round_up(x, m):
    return (x + m - 1) // m * m


def _fused_mlp_kernel(x_ref, tlc_ref, nlc_ref, nc_ref, y_ref,
                      w1_ref, w2m_ref, w2v_ref, b_ref,
                      mean_ref, logvar_ref,
                      *, h1_dim, z_dim, compute_dtype):
    cd = compute_dtype
    in_refs = (x_ref, tlc_ref, nlc_ref, nc_ref, y_ref)   # matches torch.cat(..., dim=1) order

    b1 = b_ref[0:1, :h1_dim]     # [b1m | b1v]
    b2m = b_ref[1:2, :z_dim]
    b2v = b_ref[2:3, :z_dim]

    # Layer 1: K-split partial dots (no lane concat).  Each segment multiplies the
    # matching sublane slice of the resident fused weight W1 = [w1m | w1v].
    h = None
    off = 0
    for r in in_refs:
        k = r.shape[1]                                   # static python int
        part = jnp.dot(r[...].astype(cd), w1_ref[off:off + k, :],
                       preferred_element_type=jnp.float32)
        h = part if h is None else h + part
        off += k
    h = jnp.maximum(h + b1, 0.0)                         # ReLU; Dropout(p=0) == identity

    # Layer 2: two lane-tight outputs.  w2m_full / w2v_full have a zeroed half so the
    # other branch's hidden lanes contribute nothing (no slicing of h needed).
    mean = jnp.dot(h.astype(cd), w2m_ref[...], preferred_element_type=jnp.float32) + b2m
    logv = jnp.dot(h.astype(cd), w2v_ref[...], preferred_element_type=jnp.float32) + b2v
    mean_ref[...] = mean.astype(mean_ref.dtype)
    logvar_ref[...] = logv.astype(logvar_ref.dtype)


def pack_params(p, *, weight_dtype=None):
    """Fuse the 8 per-branch tensors into 4 kernel operands. Done once, outside the kernel.

    Pass weight_dtype=jnp.bfloat16 on v6e/v7x to halve weight VMEM/DMA (biases stay f32).
    """
    w1m, w1v = p["w1m"], p["w1v"]
    w2m, w2v = p["w2m"], p["w2v"]
    weight_dtype = weight_dtype or w1m.dtype
    H = w1m.shape[1]                       # per-branch hidden width (lane_feat_dim)
    Z = w2m.shape[1]                       # z_dim
    h1 = 2 * H

    w1 = jnp.concatenate([w1m, w1v], axis=1).astype(weight_dtype)          # (in_dim, 2H)
    w2m_full = jnp.zeros((h1, Z), weight_dtype).at[:H, :].set(w2m.astype(weight_dtype))
    w2v_full = jnp.zeros((h1, Z), weight_dtype).at[H:, :].set(w2v.astype(weight_dtype))

    bcols = max(h1, Z)
    b = jnp.zeros((3, bcols), jnp.float32)                                  # biases stay f32
    b = b.at[0, :H].set(p["b1m"][0].astype(jnp.float32))
    b = b.at[0, H:h1].set(p["b1v"][0].astype(jnp.float32))
    b = b.at[1, :Z].set(p["b2m"][0].astype(jnp.float32))
    b = b.at[2, :Z].set(p["b2v"][0].astype(jnp.float32))

    return {"w1": w1, "w2m": w2m_full, "w2v": w2v_full, "b": b, "z_dim": Z, "h1": h1}


def posterior_forward(x, y, target_lane_context, neigh_lane_context, neigh_context,
                      fused, compute_dtype=None):
    """fused: output of pack_params. Returns (mean, log_var)."""
    inputs = (x, target_lane_context, neigh_lane_context, neigh_context, y)
    B = x.shape[0]
    h1, z = fused["h1"], fused["z_dim"]
    cd = compute_dtype or x.dtype          # keep f32 on v5e; bf16 only if inputs/weights are bf16

    # Batch tile: big enough to amortize per-grid-step overhead, small enough that
    # large B still gives >=2 grid steps (v7x megacore sharding via "parallel").
    block_b = min(512, _round_up(max(B, 1), 8))
    grid = (pl.cdiv(B, block_b),)          # no jnp.pad: Pallas masks the ragged tail block

    kernel = functools.partial(_fused_mlp_kernel, h1_dim=h1, z_dim=z, compute_dtype=cd)

    in_specs = [pl.BlockSpec((block_b, a.shape[1]), lambda i: (i, 0)) for a in inputs]
    in_specs += [pl.BlockSpec(fused[k].shape, lambda i: (0, 0))        # resident constants
                 for k in ("w1", "w2m", "w2v", "b")]

    out_shape = (jax.ShapeDtypeStruct((B, z), x.dtype),
                 jax.ShapeDtypeStruct((B, z), x.dtype))
    out_specs = (pl.BlockSpec((block_b, z), lambda i: (i, 0)),
                 pl.BlockSpec((block_b, z), lambda i: (i, 0)))

    mean, logvar = pl.pallas_call(
        kernel,
        out_shape=out_shape,
        grid_spec=pltpu.PrefetchScalarGridSpec(
            num_scalar_prefetch=0,
            grid=grid,
            in_specs=in_specs,
            out_specs=out_specs,
        ),
        compiler_params=pltpu.CompilerParams(dimension_semantics=("parallel",)),
    )(*inputs, fused["w1"], fused["w2m"], fused["w2v"], fused["b"])
    return mean, logvar


def init_params(key, traj_enc_h_dim, lane_feat_dim, z_dim, dtype=jnp.float32):
    input_dim = 2 * lane_feat_dim + 3 * traj_enc_h_dim
    ks = jax.random.split(key, 8)
    scale = 0.05
    return {
        "w1m": scale * jax.random.normal(ks[0], (input_dim, lane_feat_dim), dtype),
        "b1m": scale * jax.random.normal(ks[1], (1, lane_feat_dim), dtype),
        "w2m": scale * jax.random.normal(ks[2], (lane_feat_dim, z_dim), dtype),
        "b2m": scale * jax.random.normal(ks[3], (1, z_dim), dtype),
        "w1v": scale * jax.random.normal(ks[4], (input_dim, lane_feat_dim), dtype),
        "b1v": scale * jax.random.normal(ks[5], (1, lane_feat_dim), dtype),
        "w2v": scale * jax.random.normal(ks[6], (lane_feat_dim, z_dim), dtype),
        "b2v": scale * jax.random.normal(ks[7], (1, z_dim), dtype),
    }


def _reference_forward(x, y, tlc, nlc, nc, p):
    xcat = jnp.concatenate((x, tlc, nlc, nc, y), axis=1)
    h_m = jnp.maximum(xcat @ p["w1m"] + p["b1m"], 0.0)
    mean = h_m @ p["w2m"] + p["b2m"]
    h_v = jnp.maximum(xcat @ p["w1v"] + p["b1v"], 0.0)
    logvar = h_v @ p["w2v"] + p["b2v"]
    return mean, logvar


if __name__ == "__main__":
    traj_enc_h_dim = 32
    lane_feat_dim = 32
    z_dim = 16
    batch = 8

    key = jax.random.PRNGKey(0)
    k_in, k_par = jax.random.split(key)
    kx, ky, kt, knl, knc = jax.random.split(k_in, 5)

    x = jax.random.normal(kx, (batch, traj_enc_h_dim), jnp.float32)
    y = jax.random.normal(ky, (batch, traj_enc_h_dim), jnp.float32)
    target_lane_context = jax.random.normal(kt, (batch, lane_feat_dim), jnp.float32)
    neigh_lane_context = jax.random.normal(knl, (batch, lane_feat_dim), jnp.float32)
    neigh_context = jax.random.normal(knc, (batch, traj_enc_h_dim), jnp.float32)

    params = init_params(k_par, traj_enc_h_dim, lane_feat_dim, z_dim)
    fused = pack_params(params)   # pass weight_dtype=jnp.bfloat16 on v6e/v7x if desired

    mean, logvar = posterior_forward(
        x, y, target_lane_context, neigh_lane_context, neigh_context, fused)
    jax.block_until_ready((mean, logvar))

    # Sanity check against a plain-JAX reference (unfused params).
    ref_mean, ref_logvar = _reference_forward(
        x, y, target_lane_context, neigh_lane_context, neigh_context, params)
    assert mean.shape == (batch, z_dim) and logvar.shape == (batch, z_dim)
    assert jnp.allclose(mean, ref_mean, atol=1e-4, rtol=1e-4)
    assert jnp.allclose(logvar, ref_logvar, atol=1e-4, rtol=1e-4)

    print("KERNEL_OK")
</pallas_src>

<mosaic_0001>
module attributes {stable_mosaic.version = 11 : i64} {
  func.func @_fused_mlp_kernel(%arg0: i32, %arg1: memref<8x32xf32, #tpu.memory_space<vmem>>, %arg2: memref<8x32xf32, #tpu.memory_space<vmem>>, %arg3: memref<8x32xf32, #tpu.memory_space<vmem>>, %arg4: memref<8x32xf32, #tpu.memory_space<vmem>>, %arg5: memref<8x32xf32, #tpu.memory_space<vmem>>, %arg6: memref<160x64xf32, #tpu.memory_space<vmem>>, %arg7: memref<64x16xf32, #tpu.memory_space<vmem>>, %arg8: memref<64x16xf32, #tpu.memory_space<vmem>>, %arg9: memref<3x64xf32, #tpu.memory_space<vmem>>, %arg10: memref<8x16xf32, #tpu.memory_space<vmem>>, %arg11: memref<8x16xf32, #tpu.memory_space<vmem>>) attributes {dimension_semantics = [#tpu.dimension_semantics<parallel>], iteration_bounds = array<i64: 1>, scalar_prefetch = 0 : i64, scratch_operands = 0 : i64, tpu.core_type = #tpu.core_type<tc>, window_params = [{transform_indices = @transform_0, window_bounds = array<i64: 8, 32>}, {transform_indices = @transform_1, window_bounds = array<i64: 8, 32>}, {transform_indices = @transform_2, window_bounds = array<i64: 8, 32>}, {transform_indices = @transform_3, window_bounds = array<i64: 8, 32>}, {transform_indices = @transform_4, window_bounds = array<i64: 8, 32>}, {pipeline_mode = #tpu.pipeline_mode<synchronous>, transform_indices = @transform_5, window_bounds = array<i64: 160, 64>}, {pipeline_mode = #tpu.pipeline_mode<synchronous>, transform_indices = @transform_6, window_bounds = array<i64: 64, 16>}, {pipeline_mode = #tpu.pipeline_mode<synchronous>, transform_indices = @transform_7, window_bounds = array<i64: 64, 16>}, {pipeline_mode = #tpu.pipeline_mode<synchronous>, transform_indices = @transform_8, window_bounds = array<i64: 3, 64>}, {transform_indices = @transform_9, window_bounds = array<i64: 8, 16>}, {transform_indices = @transform_10, window_bounds = array<i64: 8, 16>}]} {
    %c0 = arith.constant 0 : index
    %c0_0 = arith.constant 0 : index
    %0 = vector.load %arg9[%c0, %c0_0] : memref<3x64xf32, #tpu.memory_space<vmem>>, vector<1x64xf32>
    %c1 = arith.constant 1 : index
    %c0_1 = arith.constant 0 : index
    %1 = vector.load %arg9[%c1, %c0_1] : memref<3x64xf32, #tpu.memory_space<vmem>>, vector<1x16xf32>
    %c2 = arith.constant 2 : index
    %c0_2 = arith.constant 0 : index
    %2 = vector.load %arg9[%c2, %c0_2] : memref<3x64xf32, #tpu.memory_space<vmem>>, vector<1x16xf32>
    %c0_3 = arith.constant 0 : index
    %c0_4 = arith.constant 0 : index
    %3 = vector.load %arg1[%c0_3, %c0_4] : memref<8x32xf32, #tpu.memory_space<vmem>>, vector<8x32xf32>
    %c0_5 = arith.constant 0 : index
    %c0_6 = arith.constant 0 : index
    %4 = vector.load %arg6[%c0_5, %c0_6] : memref<160x64xf32, #tpu.memory_space<vmem>>, vector<32x64xf32>
    %cst = arith.constant dense<0.000000e+00> : vector<8x64xf32>
    %5 = tpu.matmul %3, %4, %cst {dimension_numbers = #tpu.dot_dimension_numbers<[1], [0], [0], [1], [0, 0, 1, 1], [], []>} : vector<8x32xf32>, vector<32x64xf32>, vector<8x64xf32> -> vector<8x64xf32>
    %c0_7 = arith.constant 0 : index
    %c0_8 = arith.constant 0 : index
    %6 = vector.load %arg2[%c0_7, %c0_8] : memref<8x32xf32, #tpu.memory_space<vmem>>, vector<8x32xf32>
    %c32 = arith.constant 32 : index
    %c0_9 = arith.constant 0 : index
    %7 = vector.load %arg6[%c32, %c0_9] : memref<160x64xf32, #tpu.memory_space<vmem>>, vector<32x64xf32>
    %cst_10 = arith.constant dense<0.000000e+00> : vector<8x64xf32>
    %8 = tpu.matmul %6, %7, %cst_10 {dimension_numbers = #tpu.dot_dimension_numbers<[1], [0], [0], [1], [0, 0, 1, 1], [], []>} : vector<8x32xf32>, vector<32x64xf32>, vector<8x64xf32> -> vector<8x64xf32>
    %9 = arith.addf %5, %8 : vector<8x64xf32>
    %c0_11 = arith.constant 0 : index
    %c0_12 = arith.constant 0 : index
    %10 = vector.load %arg3[%c0_11, %c0_12] : memref<8x32xf32, #tpu.memory_space<vmem>>, vector<8x32xf32>
    %c64 = arith.constant 64 : index
    %c0_13 = arith.constant 0 : index
    %11 = vector.load %arg6[%c64, %c0_13] : memref<160x64xf32, #tpu.memory_space<vmem>>, vector<32x64xf32>
    %cst_14 = arith.constant dense<0.000000e+00> : vector<8x64xf32>
    %12 = tpu.matmul %10, %11, %cst_14 {dimension_numbers = #tpu.dot_dimension_numbers<[1], [0], [0], [1], [0, 0, 1, 1], [], []>} : vector<8x32xf32>, vector<32x64xf32>, vector<8x64xf32> -> vector<8x64xf32>
    %13 = arith.addf %9, %12 : vector<8x64xf32>
    %c0_15 = arith.constant 0 : index
    %c0_16 = arith.constant 0 : index
    %14 = vector.load %arg4[%c0_15, %c0_16] : memref<8x32xf32, #tpu.memory_space<vmem>>, vector<8x32xf32>
    %c96 = arith.constant 96 : index
    %c0_17 = arith.constant 0 : index
    %15 = vector.load %arg6[%c96, %c0_17] : memref<160x64xf32, #tpu.memory_space<vmem>>, vector<32x64xf32>
    %cst_18 = arith.constant dense<0.000000e+00> : vector<8x64xf32>
    %16 = tpu.matmul %14, %15, %cst_18 {dimension_numbers = #tpu.dot_dimension_numbers<[1], [0], [0], [1], [0, 0, 1, 1], [], []>} : vector<8x32xf32>, vector<32x64xf32>, vector<8x64xf32> -> vector<8x64xf32>
    %17 = arith.addf %13, %16 : vector<8x64xf32>
    %c0_19 = arith.constant 0 : index
    %c0_20 = arith.constant 0 : index
    %18 = vector.load %arg5[%c0_19, %c0_20] : memref<8x32xf32, #tpu.memory_space<vmem>>, vector<8x32xf32>
    %c128 = arith.constant 128 : index
    %c0_21 = arith.constant 0 : index
    %19 = vector.load %arg6[%c128, %c0_21] : memref<160x64xf32, #tpu.memory_space<vmem>>, vector<32x64xf32>
    %cst_22 = arith.constant dense<0.000000e+00> : vector<8x64xf32>
    %20 = tpu.matmul %18, %19, %cst_22 {dimension_numbers = #tpu.dot_dimension_numbers<[1], [0], [0], [1], [0, 0, 1, 1], [], []>} : vector<8x32xf32>, vector<32x64xf32>, vector<8x64xf32> -> vector<8x64xf32>
    %21 = arith.addf %17, %20 : vector<8x64xf32>
    %22 = vector.broadcast %0 : vector<1x64xf32> to vector<8x64xf32>
    %23 = arith.addf %21, %22 : vector<8x64xf32>
    %cst_23 = arith.constant 0.000000e+00 : f32
    %24 = vector.broadcast %cst_23 : f32 to vector<8x64xf32>
    %25 = arith.maximumf %23, %24 : vector<8x64xf32>
    %c0_24 = arith.constant 0 : index
    %c0_25 = arith.constant 0 : index
    %26 = vector.load %arg7[%c0_24, %c0_25] : memref<64x16xf32, #tpu.memory_space<vmem>>, vector<64x16xf32>
    %cst_26 = arith.constant dense<0.000000e+00> : vector<8x16xf32>
    %27 = tpu.matmul %25, %26, %cst_26 {dimension_numbers = #tpu.dot_dimension_numbers<[1], [0], [0], [1], [0, 0, 1, 1], [], []>} : vector<8x64xf32>, vector<64x16xf32>, vector<8x16xf32> -> vector<8x16xf32>
    %28 = vector.broadcast %1 : vector<1x16xf32> to vector<8x16xf32>
    %29 = arith.addf %27, %28 : vector<8x16xf32>
    %c0_27 = arith.constant 0 : index
    %c0_28 = arith.constant 0 : index
    %30 = vector.load %arg8[%c0_27, %c0_28] : memref<64x16xf32, #tpu.memory_space<vmem>>, vector<64x16xf32>
    %cst_29 = arith.constant dense<0.000000e+00> : vector<8x16xf32>
    %31 = tpu.matmul %25, %30, %cst_29 {dimension_numbers = #tpu.dot_dimension_numbers<[1], [0], [0], [1], [0, 0, 1, 1], [], []>} : vector<8x64xf32>, vector<64x16xf32>, vector<8x16xf32> -> vector<8x16xf32>
    %32 = vector.broadcast %2 : vector<1x16xf32> to vector<8x16xf32>
    %33 = arith.addf %31, %32 : vector<8x16xf32>
    %c0_30 = arith.constant 0 : index
    %c0_31 = arith.constant 0 : index
    %34 = vector.load %arg10[%c0_30, %c0_31] : memref<8x16xf32, #tpu.memory_space<vmem>>, vector<8x16xf32>
    tpu.vector_store %arg10[%c0_30, %c0_31], %29 {strides = array<i32>} : memref<8x16xf32, #tpu.memory_space<vmem>>, vector<8x16xf32>,
    %c0_32 = arith.constant 0 : index
    %c0_33 = arith.constant 0 : index
    %35 = vector.load %arg11[%c0_32, %c0_33] : memref<8x16xf32, #tpu.memory_space<vmem>>, vector<8x16xf32>
    tpu.vector_store %arg11[%c0_32, %c0_33], %33 {strides = array<i32>} : memref<8x16xf32, #tpu.memory_space<vmem>>, vector<8x16xf32>,
    return
  }
  func.func @transform_0(%arg0: i32) -> (i32, i32) {
    %c0_i32 = arith.constant 0 : i32
    %c0_i32_0 = arith.constant 0 : i32
    return %arg0, %c0_i32 : i32, i32
  }
  func.func @transform_1(%arg0: i32) -> (i32, i32) {
    %c0_i32 = arith.constant 0 : i32
    %c0_i32_0 = arith.constant 0 : i32
    return %arg0, %c0_i32 : i32, i32
  }
  func.func @transform_2(%arg0: i32) -> (i32, i32) {
    %c0_i32 = arith.constant 0 : i32
    %c0_i32_0 = arith.constant 0 : i32
    return %arg0, %c0_i32 : i32, i32
  }
  func.func @transform_3(%arg0: i32) -> (i32, i32) {
    %c0_i32 = arith.constant 0 : i32
    %c0_i32_0 = arith.constant 0 : i32
    return %arg0, %c0_i32 : i32, i32
  }
  func.func @transform_4(%arg0: i32) -> (i32, i32) {
    %c0_i32 = arith.constant 0 : i32
    %c0_i32_0 = arith.constant 0 : i32
    return %arg0, %c0_i32 : i32, i32
  }
  func.func @transform_5(%arg0: i32) -> (i32, i32) {
    %c0_i32 = arith.constant 0 : i32
    %c0_i32_0 = arith.constant 0 : i32
    %c0_i32_1 = arith.constant 0 : i32
    return %c0_i32, %c0_i32_0 : i32, i32
  }
  func.func @transform_6(%arg0: i32) -> (i32, i32) {
    %c0_i32 = arith.constant 0 : i32
    %c0_i32_0 = arith.constant 0 : i32
    %c0_i32_1 = arith.constant 0 : i32
    return %c0_i32, %c0_i32_0 : i32, i32
  }
  func.func @transform_7(%arg0: i32) -> (i32, i32) {
    %c0_i32 = arith.constant 0 : i32
    %c0_i32_0 = arith.constant 0 : i32
    %c0_i32_1 = arith.constant 0 : i32
    return %c0_i32, %c0_i32_0 : i32, i32
  }
  func.func @transform_8(%arg0: i32) -> (i32, i32) {
    %c0_i32 = arith.constant 0 : i32
    %c0_i32_0 = arith.constant 0 : i32
    %c0_i32_1 = arith.constant 0 : i32
    return %c0_i32, %c0_i32_0 : i32, i32
  }
  func.func @transform_9(%arg0: i32) -> (i32, i32) {
    %c0_i32 = arith.constant 0 : i32
    %c0_i32_0 = arith.constant 0 : i32
    return %arg0, %c0_i32 : i32, i32
  }
  func.func @transform_10(%arg0: i32) -> (i32, i32) {
    %c0_i32 = arith.constant 0 : i32
    %c0_i32_0 = arith.constant 0 : i32
    return %arg0, %c0_i32 : i32, i32
  }
}

</mosaic_0001>

<llo_original>
// kernel: tpu_custom_call.1
$region0: #{tpu_custom_call.1}
  #allocation0 [shape = 'u32[]', space=smem, size = 0x4, offset = 0x4, fixed_abs, tag = 'smem constant byte address 0x4 - core index']
  #allocation1 [shape = 'u32[144,128]{1,0:T(1,128)}', space=vmem, size = 0x12000, scoped, tag = 'internal scratch']
  %s0 = inlined_call_operand.vmem [shape: f32[8,32], index: 0, kind: input, shape index: {}]
  %s1 = inlined_call_operand.vmem [shape: f32[8,32], index: 1, kind: input, shape index: {}]
  %s2 = inlined_call_operand.vmem [shape: f32[8,32], index: 2, kind: input, shape index: {}]
  %s3 = inlined_call_operand.vmem [shape: f32[8,32], index: 3, kind: input, shape index: {}]
  %s4 = inlined_call_operand.vmem [shape: f32[8,32], index: 4, kind: input, shape index: {}]
  %s5 = inlined_call_operand.vmem [shape: f32[160,64], index: 5, kind: input, shape index: {}]
  %s6 = inlined_call_operand.vmem [shape: f32[64,16], index: 6, kind: input, shape index: {}]
  %s7 = inlined_call_operand.vmem [shape: f32[64,16], index: 7, kind: input, shape index: {}]
  %s8 = inlined_call_operand.vmem [shape: f32[3,64], index: 8, kind: input, shape index: {}]
  %s9 = inlined_call_operand.hbm [shape: f32[8,16], index: 9, kind: output, shape index: {0}]
  %s10 = inlined_call_operand.hbm [shape: f32[8,16], index: 10, kind: output, shape index: {1}]
  %11 = xla_tuple %s9, %s10
  %s12 = sld [smem:[#allocation0]]
  $region54: #{tpu_custom_call.1} parent=0
    _
  %s14 = ssub.s32 1, %s12
  %s15 = scalar_select 0, %s14, %s12
  $region1: #{tpu_custom_call.1} parent=0
    #allocation2 [shape = 'u8[4096]{0}', space=vmem, size = 0x1000, scoped, tag = 'output window, operand 0, single buffered']
    #allocation3 [shape = 's32[1]{0}', space=sflag, size = 0x4, scoped, tag = 'scoped memory for tpu_custom_call.1']
    #allocation4 [shape = 'u8[4096]{0}', space=vmem, size = 0x1000, scoped, tag = 'output window, operand 1, single buffered']
    #allocation5 [shape = 's32[1]{0}', space=sflag, size = 0x4, scoped, tag = 'scoped memory for tpu_custom_call.1']
    %16 = vsyncpa [#allocation3], 0
    %17 = vsyncpa [#allocation5], 0
    // Predicated region
    $region2: #{tpu_custom_call.1} parent=1 // pred_check
      _
    $region3: #{tpu_custom_call.1} parent=1 // pred_check_branch
      %19 = sbr.rel (0) target = $region5
    $region4: #{tpu_custom_call.1} parent=1 // pred_region
      _
    $region5: #{tpu_custom_call.1} parent=1 // pred_fallthru
      _
    // Predicated region
    $region6: #{tpu_custom_call.1} parent=1 // pred_check
      _
    $region7: #{tpu_custom_call.1} parent=1 // pred_check_branch
      %21 = sbr.rel (0) target = $region9
    $region8: #{tpu_custom_call.1} parent=1 // pred_region
      _
    $region9: #{tpu_custom_call.1} parent=1 // pred_fallthru
      _
    // Predicated region
    $region10: #{tpu_custom_call.1} parent=1 // pred_check
      _
    $region11: #{tpu_custom_call.1} parent=1 // pred_check_branch
      %23 = sbr.rel (0) target = $region13
    $region12: #{tpu_custom_call.1} parent=1 // pred_region
      _
    $region13: #{tpu_custom_call.1} parent=1 // pred_fallthru
      _
    // Predicated region
    $region14: #{tpu_custom_call.1} parent=1 // pred_check
      _
    $region15: #{tpu_custom_call.1} parent=1 // pred_check_branch
      %25 = sbr.rel (0) target = $region17
    $region16: #{tpu_custom_call.1} parent=1 // pred_region
      _
    $region17: #{tpu_custom_call.1} parent=1 // pred_fallthru
      _
    // Predicated region
    $region18: #{tpu_custom_call.1} parent=1 // pred_check
      _
    $region19: #{tpu_custom_call.1} parent=1 // pred_check_branch
      %27 = sbr.rel (0) target = $region21
    $region20: #{tpu_custom_call.1} parent=1 // pred_region
      _
    $region21: #{tpu_custom_call.1} parent=1 // pred_fallthru
      _
    // Predicated region
    $region22: #{tpu_custom_call.1} parent=1 // pred_check
      _
    $region23: #{tpu_custom_call.1} parent=1 // pred_check_branch
      %29 = sbr.rel (0) target = $region25
    $region24: #{tpu_custom_call.1} parent=1 // pred_region
      _
    $region25: #{tpu_custom_call.1} parent=1 // pred_fallthru
      _
    // Predicated region
    $region26: #{tpu_custom_call.1} parent=1 // pred_check
      _
    $region27: #{tpu_custom_call.1} parent=1 // pred_check_branch
      %31 = sbr.rel (0) target = $region29
    $region28: #{tpu_custom_call.1} parent=1 // pred_region
      _
    $region29: #{tpu_custom_call.1} parent=1 // pred_fallthru
      _
    // Predicated region
    $region30: #{tpu_custom_call.1} parent=1 // pred_check
      _
    $region31: #{tpu_custom_call.1} parent=1 // pred_check_branch
      %33 = sbr.rel (0) target = $region33
    $region32: #{tpu_custom_call.1} parent=1 // pred_region
      _
    $region33: #{tpu_custom_call.1} parent=1 // pred_fallthru
      _
    // Predicated region
    $region34: #{tpu_custom_call.1} parent=1 // pred_check
      _
    $region35: #{tpu_custom_call.1} parent=1 // pred_check_branch
      %35 = sbr.rel (0) target = $region37
    $region36: #{tpu_custom_call.1} parent=1 // pred_region
      _
    $region37: #{tpu_custom_call.1} parent=1 // pred_fallthru
      _
    %v36 = vld [vmem:[%s8] sm:$0x1]
    %v37 = vld [vmem:[%s8 + $0x1] sm:$0x1]
    %v38 = vld [vmem:[%s8 + $0x2] sm:$0x1]
    %v39 = vld [vmem:[%s0] sm:$0xff]
    %v40 = vld [vmem:[%s5] sm:$0xff]
    %v41 = vld [vmem:[%s5 + $0x8] sm:$0xff]
    %v42 = vld [vmem:[%s5 + $0x10] sm:$0xff]
    %v43 = vld [vmem:[%s5 + $0x18] sm:$0xff]
    %v44 = vld [vmem:[%s1] sm:$0xff]
    %v45 = vld [vmem:[%s5 + $0x20] sm:$0xff]
    %v46 = vld [vmem:[%s5 + $0x28] sm:$0xff]
    %v47 = vld [vmem:[%s5 + $0x30] sm:$0xff]
    %v48 = vld [vmem:[%s5 + $0x38] sm:$0xff]
    %vm49 = vcmask 261120
    %v51 = vsel %vm49, %v44, 0
    %53 = vmatprep.subr.mxu0 0.0
    %54 = vmatpush1.msra.mxu0 %v45
    %55 = vmatprep.subr.mxu0 0.0
    %56 = vmatpush1.msra.mxu0 %v46
    %57 = vmatprep.subr.mxu0 0.0
    %58 = vmatpush1.msra.mxu0 %v47
    %59 = vmatprep.subr.mxu0 0.0
    %60 = vmatpush1.msra.mxu0 %v48
    %61 = vmatprep.subr.mxu0 0.0
    %62 = vmatpush1.msra.mxu0 0.0
    %63 = vmatprep.subr.mxu0 0.0
    %64 = vmatpush1.msra.mxu0 0.0
    %65 = vmatprep.subr.mxu0 0.0
    %66 = vmatpush1.msra.mxu0 0.0
    %67 = vmatprep.subr.mxu0 0.0
    %68 = vmatpush1.msra.mxu0 0.0
    %69 = vmatprep.subr.mxu0 0.0
    %70 = vmatpush1.msra.mxu0 0.0
    %71 = vmatprep.subr.mxu0 0.0
    %72 = vmatpush1.msra.mxu0 0.0
    %73 = vmatprep.subr.mxu0 0.0
    %74 = vmatpush1.msra.mxu0 0.0
    %75 = vmatprep.subr.mxu0 0.0
    %76 = vmatpush1.msra.mxu0 0.0
    %77 = vmatprep.subr.mxu0 0.0
    %78 = vmatpush1.msra.mxu0 0.0
    %79 = vmatprep.subr.mxu0 0.0
    %80 = vmatpush1.msra.mxu0 0.0
    %81 = vmatprep.subr.mxu0 0.0
    %82 = vmatpush1.msra.mxu0 0.0
    %83 = vmatprep.subr.mxu0 0.0
    %84 = vmatpush1.msra.mxu0 0.0
    %85 = vmatprep.subr.mxu0 0.0
    %86 = vmatpush1.msra.mxu0 0.0
    %87 = vmatprep.subr.mxu0 0.0
    %88 = vmatpush1.msra.mxu0 0.0
    %89 = vmatprep.subr.mxu0 0.0
    %90 = vmatpush1.msra.mxu0 0.0
    %91 = vmatprep.subr.mxu0 0.0
    %92 = vmatpush1.msra.mxu0 0.0
    %93 = vmatprep.subr.mxu0 0.0
    %94 = vmatpush1.msra.mxu0 0.0
    %95 = vmatprep.subr.mxu0 0.0
    %96 = vmatpush1.msra.mxu0 0.0
    %97 = vmatprep.subr.mxu0 0.0
    %98 = vmatpush1.msra.mxu0 0.0
    %99 = vmatprep.subr.mxu0 0.0
    %100 = vmatpush1.msra.mxu0 0.0
    %101 = vmatprep.subr.mxu0 0.0
    %102 = vmatpush1.msra.mxu0 0.0
    %103 = vmatprep.subr.mxu0 0.0
    %104 = vmatpush1.msra.mxu0 0.0
    %105 = vmatprep.subr.mxu0 0.0
    %106 = vmatpush1.msra.mxu0 0.0
    %107 = vmatprep.subr.mxu0 0.0
    %108 = vmatpush1.msra.mxu0 0.0
    %109 = vmatprep.subr.mxu0 0.0
    %110 = vmatpush1.msra.mxu0 0.0
    %111 = vmatprep.subr.mxu0 0.0
    %112 = vmatpush1.msra.mxu0 0.0
    %113 = vmatprep.subr.mxu0 0.0
    %114 = vmatpush1.msra.mxu0 0.0
    %115 = vmatprep.subr.mxu0 0.0
    %116 = vmatpush1.msra.mxu0 0.0
    %117 = vmatprep.mubr.f32.mxu0 0.0
    %118 = vmatmul.mubr.f32.gmra.mrb[0].mxu0 %v51
    %v119 = vpop.f32.mrb[0].mxu0
    %v120 = vadd.f32 0.0, %v119
    %v121 = vpop.f32.mrb[0].mxu0
    %122 = vdwg.mxu0
    %v124 = vsel %vm49, %v39, 0
    %126 = vmatprep.subr.mxu0 0.0
    %127 = vmatpush1.msra.mxu0 %v40
    %128 = vmatprep.subr.mxu0 0.0
    %129 = vmatpush1.msra.mxu0 %v41
    %130 = vmatprep.subr.mxu0 0.0
    %131 = vmatpush1.msra.mxu0 %v42
    %132 = vmatprep.subr.mxu0 0.0
    %133 = vmatpush1.msra.mxu0 %v43
    %134 = vmatprep.subr.mxu0 0.0
    %135 = vmatpush1.msra.mxu0 0.0
    %136 = vmatprep.subr.mxu0 0.0
    %137 = vmatpush1.msra.mxu0 0.0
    %138 = vmatprep.subr.mxu0 0.0
    %139 = vmatpush1.msra.mxu0 0.0
    %140 = vmatprep.subr.mxu0 0.0
    %141 = vmatpush1.msra.mxu0 0.0
    %142 = vmatprep.subr.mxu0 0.0
    %143 = vmatpush1.msra.mxu0 0.0
    %144 = vmatprep.subr.mxu0 0.0
    %145 = vmatpush1.msra.mxu0 0.0
    %146 = vmatprep.subr.mxu0 0.0
    %147 = vmatpush1.msra.mxu0 0.0
    %148 = vmatprep.subr.mxu0 0.0
    %149 = vmatpush1.msra.mxu0 0.0
    %150 = vmatprep.subr.mxu0 0.0
    %151 = vmatpush1.msra.mxu0 0.0
    %152 = vmatprep.subr.mxu0 0.0
    %153 = vmatpush1.msra.mxu0 0.0
    %154 = vmatprep.subr.mxu0 0.0
    %155 = vmatpush1.msra.mxu0 0.0
    %156 = vmatprep.subr.mxu0 0.0
    %157 = vmatpush1.msra.mxu0 0.0
    %158 = vmatprep.subr.mxu0 0.0
    %159 = vmatpush1.msra.mxu0 0.0
    %160 = vmatprep.subr.mxu0 0.0
    %161 = vmatpush1.msra.mxu0 0.0
    %162 = vmatprep.subr.mxu0 0.0
    %163 = vmatpush1.msra.mxu0 0.0
    %164 = vmatprep.subr.mxu0 0.0
    %165 = vmatpush1.msra.mxu0 0.0
    %166 = vmatprep.subr.mxu0 0.0
    %167 = vmatpush1.msra.mxu0 0.0
    %168 = vmatprep.subr.mxu0 0.0
    %169 = vmatpush1.msra.mxu0 0.0
    %170 = vmatprep.subr.mxu0 0.0
    %171 = vmatpush1.msra.mxu0 0.0
    %172 = vmatprep.subr.mxu0 0.0
    %173 = vmatpush1.msra.mxu0 0.0
    %174 = vmatprep.subr.mxu0 0.0
    %175 = vmatpush1.msra.mxu0 0.0
    %176 = vmatprep.subr.mxu0 0.0
    %177 = vmatpush1.msra.mxu0 0.0
    %178 = vmatprep.subr.mxu0 0.0
    %179 = vmatpush1.msra.mxu0 0.0
    %180 = vmatprep.subr.mxu0 0.0
    %181 = vmatpush1.msra.mxu0 0.0
    %182 = vmatprep.subr.mxu0 0.0
    %183 = vmatpush1.msra.mxu0 0.0
    %184 = vmatprep.subr.mxu0 0.0
    %185 = vmatpush1.msra.mxu0 0.0
    %186 = vmatprep.subr.mxu0 0.0
    %187 = vmatpush1.msra.mxu0 0.0
    %188 = vmatprep.subr.mxu0 0.0
    %189 = vmatpush1.msra.mxu0 0.0
    %190 = vmatprep.mubr.f32.mxu0 0.0
    %191 = vmatmul.mubr.f32.gmra.mrb[0].mxu0 %v124
    %v192 = vpop.f32.mrb[0].mxu0
    %v193 = vadd.f32 %v120, %v192
    %v194 = vpop.f32.mrb[0].mxu0
    %195 = vdwg.mxu0
    %v196 = vld [vmem:[%s2] sm:$0xff]
    %v197 = vld [vmem:[%s5 + $0x40] sm:$0xff]
    %v198 = vld [vmem:[%s5 + $0x48] sm:$0xff]
    %v199 = vld [vmem:[%s5 + $0x50] sm:$0xff]
    %v200 = vld [vmem:[%s5 + $0x58] sm:$0xff]
    %v202 = vsel %vm49, %v196, 0
    %204 = vmatprep.subr.mxu0 0.0
    %205 = vmatpush1.msra.mxu0 %v197
    %206 = vmatprep.subr.mxu0 0.0
    %207 = vmatpush1.msra.mxu0 %v198
    %208 = vmatprep.subr.mxu0 0.0
    %209 = vmatpush1.msra.mxu0 %v199
    %210 = vmatprep.subr.mxu0 0.0
    %211 = vmatpush1.msra.mxu0 %v200
    %212 = vmatprep.subr.mxu0 0.0
    %213 = vmatpush1.msra.mxu0 0.0
    %214 = vmatprep.subr.mxu0 0.0
    %215 = vmatpush1.msra.mxu0 0.0
    %216 = vmatprep.subr.mxu0 0.0
    %217 = vmatpush1.msra.mxu0 0.0
    %218 = vmatprep.subr.mxu0 0.0
    %219 = vmatpush1.msra.mxu0 0.0
    %220 = vmatprep.subr.mxu0 0.0
    %221 = vmatpush1.msra.mxu0 0.0
    %222 = vmatprep.subr.mxu0 0.0
    %223 = vmatpush1.msra.mxu0 0.0
    %224 = vmatprep.subr.mxu0 0.0
    %225 = vmatpush1.msra.mxu0 0.0
    %226 = vmatprep.subr.mxu0 0.0
    %227 = vmatpush1.msra.mxu0 0.0
    %228 = vmatprep.subr.mxu0 0.0
    %229 = vmatpush1.msra.mxu0 0.0
    %230 = vmatprep.subr.mxu0 0.0
    %231 = vmatpush1.msra.mxu0 0.0
    %232 = vmatprep.subr.mxu0 0.0
    %233 = vmatpush1.msra.mxu0 0.0
    %234 = vmatprep.subr.mxu0 0.0
    %235 = vmatpush1.msra.mxu0 0.0
    %236 = vmatprep.subr.mxu0 0.0
    %237 = vmatpush1.msra.mxu0 0.0
    %238 = vmatprep.subr.mxu0 0.0
    %239 = vmatpush1.msra.mxu0 0.0
    %240 = vmatprep.subr.mxu0 0.0
    %241 = vmatpush1.msra.mxu0 0.0
    %242 = vmatprep.subr.mxu0 0.0
    %243 = vmatpush1.msra.mxu0 0.0
    %244 = vmatprep.subr.mxu0 0.0
    %245 = vmatpush1.msra.mxu0 0.0
    %246 = vmatprep.subr.mxu0 0.0
    %247 = vmatpush1.msra.mxu0 0.0
    %248 = vmatprep.subr.mxu0 0.0
    %249 = vmatpush1.msra.mxu0 0.0
    %250 = vmatprep.subr.mxu0 0.0
    %251 = vmatpush1.msra.mxu0 0.0
    %252 = vmatprep.subr.mxu0 0.0
    %253 = vmatpush1.msra.mxu0 0.0
    %254 = vmatprep.subr.mxu0 0.0
    %255 = vmatpush1.msra.mxu0 0.0
    %256 = vmatprep.subr.mxu0 0.0
    %257 = vmatpush1.msra.mxu0 0.0
    %258 = vmatprep.subr.mxu0 0.0
    %259 = vmatpush1.msra.mxu0 0.0
    %260 = vmatprep.subr.mxu0 0.0
    %261 = vmatpush1.msra.mxu0 0.0
    %262 = vmatprep.subr.mxu0 0.0
    %263 = vmatpush1.msra.mxu0 0.0
    %264 = vmatprep.subr.mxu0 0.0
    %265 = vmatpush1.msra.mxu0 0.0
    %266 = vmatprep.subr.mxu0 0.0
    %267 = vmatpush1.msra.mxu0 0.0
    %268 = vmatprep.mubr.f32.mxu0 0.0
    %269 = vmatmul.mubr.f32.gmra.mrb[0].mxu0 %v202
    %v270 = vpop.f32.mrb[0].mxu0
    %v271 = vadd.f32 0.0, %v270
    %v272 = vpop.f32.mrb[0].mxu0
    %273 = vdwg.mxu0
    %v274 = vadd.f32 %v193, %v271
    %v275 = vld [vmem:[%s3] sm:$0xff]
    %v276 = vld [vmem:[%s5 + $0x60] sm:$0xff]
    %v277 = vld [vmem:[%s5 + $0x68] sm:$0xff]
    %v278 = vld [vmem:[%s5 + $0x70] sm:$0xff]
    %v279 = vld [vmem:[%s5 + $0x78] sm:$0xff]
    %v281 = vsel %vm49, %v275, 0
    %283 = vmatprep.subr.mxu0 0.0
    %284 = vmatpush1.msra.mxu0 %v276
    %285 = vmatprep.subr.mxu0 0.0
    %286 = vmatpush1.msra.mxu0 %v277
    %287 = vmatprep.subr.mxu0 0.0
    %288 = vmatpush1.msra.mxu0 %v278
    %289 = vmatprep.subr.mxu0 0.0
    %290 = vmatpush1.msra.mxu0 %v279
    %291 = vmatprep.subr.mxu0 0.0
    %292 = vmatpush1.msra.mxu0 0.0
    %293 = vmatprep.subr.mxu0 0.0
    %294 = vmatpush1.msra.mxu0 0.0
    %295 = vmatprep.subr.mxu0 0.0
    %296 = vmatpush1.msra.mxu0 0.0
    %297 = vmatprep.subr.mxu0 0.0
    %298 = vmatpush1.msra.mxu0 0.0
    %299 = vmatprep.subr.mxu0 0.0
    %300 = vmatpush1.msra.mxu0 0.0
    %301 = vmatprep.subr.mxu0 0.0
    %302 = vmatpush1.msra.mxu0 0.0
    %303 = vmatprep.subr.mxu0 0.0
    %304 = vmatpush1.msra.mxu0 0.0
    %305 = vmatprep.subr.mxu0 0.0
    %306 = vmatpush1.msra.mxu0 0.0
    %307 = vmatprep.subr.mxu0 0.0
    %308 = vmatpush1.msra.mxu0 0.0
    %309 = vmatprep.subr.mxu0 0.0
    %310 = vmatpush1.msra.mxu0 0.0
    %311 = vmatprep.subr.mxu0 0.0
    %312 = vmatpush1.msra.mxu0 0.0
    %313 = vmatprep.subr.mxu0 0.0
    %314 = vmatpush1.msra.mxu0 0.0
    %315 = vmatprep.subr.mxu0 0.0
    %316 = vmatpush1.msra.mxu0 0.0
    %317 = vmatprep.subr.mxu0 0.0
    %318 = vmatpush1.msra.mxu0 0.0
    %319 = vmatprep.subr.mxu0 0.0
    %320 = vmatpush1.msra.mxu0 0.0
    %321 = vmatprep.subr.mxu0 0.0
    %322 = vmatpush1.msra.mxu0 0.0
    %323 = vmatprep.subr.mxu0 0.0
    %324 = vmatpush1.msra.mxu0 0.0
    %325 = vmatprep.subr.mxu0 0.0
    %326 = vmatpush1.msra.mxu0 0.0
    %327 = vmatprep.subr.mxu0 0.0
    %328 = vmatpush1.msra.mxu0 0.0
    %329 = vmatprep.subr.mxu0 0.0
    %330 = vmatpush1.msra.mxu0 0.0
    %331 = vmatprep.subr.mxu0 0.0
    %332 = vmatpush1.msra.mxu0 0.0
    %333 = vmatprep.subr.mxu0 0.0
    %334 = vmatpush1.msra.mxu0 0.0
    %335 = vmatprep.subr.mxu0 0.0
    %336 = vmatpush1.msra.mxu0 0.0
    %337 = vmatprep.subr.mxu0 0.0
    %338 = vmatpush1.msra.mxu0 0.0
    %339 = vmatprep.subr.mxu0 0.0
    %340 = vmatpush1.msra.mxu0 0.0
    %341 = vmatprep.subr.mxu0 0.0
    %342 = vmatpush1.msra.mxu0 0.0
    %343 = vmatprep.subr.mxu0 0.0
    %344 = vmatpush1.msra.mxu0 0.0
    %345 = vmatprep.subr.mxu0 0.0
    %346 = vmatpush1.msra.mxu0 0.0
    %347 = vmatprep.mubr.f32.mxu0 0.0
    %348 = vmatmul.mubr.f32.gmra.mrb[0].mxu0 %v281
    %v349 = vpop.f32.mrb[0].mxu0
    %v350 = vadd.f32 0.0, %v349
    %v351 = vpop.f32.mrb[0].mxu0
    %352 = vdwg.mxu0
    %v353 = vadd.f32 %v274, %v350
    %v354 = vld [vmem:[%s4] sm:$0xff]
    %v355 = vld [vmem:[%s5 + $0x80] sm:$0xff]
    %v356 = vld [vmem:[%s5 + $0x88] sm:$0xff]
    %v357 = vld [vmem:[%s5 + $0x90] sm:$0xff]
    %v358 = vld [vmem:[%s5 + $0x98] sm:$0xff]
    %v360 = vsel %vm49, %v354, 0
    %362 = vmatprep.subr.mxu0 0.0
    %363 = vmatpush1.msra.mxu0 %v355
    %364 = vmatprep.subr.mxu0 0.0
    %365 = vmatpush1.msra.mxu0 %v356
    %366 = vmatprep.subr.mxu0 0.0
    %367 = vmatpush1.msra.mxu0 %v357
    %368 = vmatprep.subr.mxu0 0.0
    %369 = vmatpush1.msra.mxu0 %v358
    %370 = vmatprep.subr.mxu0 0.0
    %371 = vmatpush1.msra.mxu0 0.0
    %372 = vmatprep.subr.mxu0 0.0
    %373 = vmatpush1.msra.mxu0 0.0
    %374 = vmatprep.subr.mxu0 0.0
    %375 = vmatpush1.msra.mxu0 0.0
    %376 = vmatprep.subr.mxu0 0.0
    %377 = vmatpush1.msra.mxu0 0.0
    %378 = vmatprep.subr.mxu0 0.0
    %379 = vmatpush1.msra.mxu0 0.0
    %380 = vmatprep.subr.mxu0 0.0
    %381 = vmatpush1.msra.mxu0 0.0
    %382 = vmatprep.subr.mxu0 0.0
    %383 = vmatpush1.msra.mxu0 0.0
    %384 = vmatprep.subr.mxu0 0.0
    %385 = vmatpush1.msra.mxu0 0.0
    %386 = vmatprep.subr.mxu0 0.0
    %387 = vmatpush1.msra.mxu0 0.0
    %388 = vmatprep.subr.mxu0 0.0
    %389 = vmatpush1.msra.mxu0 0.0
    %390 = vmatprep.subr.mxu0 0.0
    %391 = vmatpush1.msra.mxu0 0.0
    %392 = vmatprep.subr.mxu0 0.0
    %393 = vmatpush1.msra.mxu0 0.0
    %394 = vmatprep.subr.mxu0 0.0
    %395 = vmatpush1.msra.mxu0 0.0
    %396 = vmatprep.subr.mxu0 0.0
    %397 = vmatpush1.msra.mxu0 0.0
    %398 = vmatprep.subr.mxu0 0.0
    %399 = vmatpush1.msra.mxu0 0.0
    %400 = vmatprep.subr.mxu0 0.0
    %401 = vmatpush1.msra.mxu0 0.0
    %402 = vmatprep.subr.mxu0 0.0
    %403 = vmatpush1.msra.mxu0 0.0
    %404 = vmatprep.subr.mxu0 0.0
    %405 = vmatpush1.msra.mxu0 0.0
    %406 = vmatprep.subr.mxu0 0.0
    %407 = vmatpush1.msra.mxu0 0.0
    %408 = vmatprep.subr.mxu0 0.0
    %409 = vmatpush1.msra.mxu0 0.0
    %410 = vmatprep.subr.mxu0 0.0
    %411 = vmatpush1.msra.mxu0 0.0
    %412 = vmatprep.subr.mxu0 0.0
    %413 = vmatpush1.msra.mxu0 0.0
    %414 = vmatprep.subr.mxu0 0.0
    %415 = vmatpush1.msra.mxu0 0.0
    %416 = vmatprep.subr.mxu0 0.0
    %417 = vmatpush1.msra.mxu0 0.0
    %418 = vmatprep.subr.mxu0 0.0
    %419 = vmatpush1.msra.mxu0 0.0
    %420 = vmatprep.subr.mxu0 0.0
    %421 = vmatpush1.msra.mxu0 0.0
    %422 = vmatprep.subr.mxu0 0.0
    %423 = vmatpush1.msra.mxu0 0.0
    %424 = vmatprep.subr.mxu0 0.0
    %425 = vmatpush1.msra.mxu0 0.0
    %426 = vmatprep.mubr.f32.mxu0 0.0
    %427 = vmatmul.mubr.f32.gmra.mrb[0].mxu0 %v360
    %v428 = vpop.f32.mrb[0].mxu0
    %v429 = vadd.f32 0.0, %v428
    %v430 = vpop.f32.mrb[0].mxu0
    %431 = vdwg.mxu0
    %v432 = vadd.f32 %v353, %v429
    %v433 = vlaneseq
    %v434 = vshrl.u32 %v433, 7
    %v435 = vsub.s32 0, %v434
    %v436 = vrot.slane %v36, %v435
    %v437 = vadd.f32 %v432, %v436
    %v438 = vmax.f32 %v437, 0.0
    %v439 = vld [vmem:[%s6] sm:$0xff]
    %v440 = vld [vmem:[%s6 + $0x8] sm:$0xff]
    %v441 = vld [vmem:[%s6 + $0x10] sm:$0xff]
    %v442 = vld [vmem:[%s6 + $0x18] sm:$0xff]
    %v443 = vld [vmem:[%s6 + $0x20] sm:$0xff]
    %v444 = vld [vmem:[%s6 + $0x28] sm:$0xff]
    %v445 = vld [vmem:[%s6 + $0x30] sm:$0xff]
    %v446 = vld [vmem:[%s6 + $0x38] sm:$0xff]
    %v447 = vlaneseq
    %v448 = vshrl.u32 %v447, 7
    %v449 = vsub.s32 0, %v448
    %v450 = vrot.slane %v37, %v449
    %vm451 = vcmask 523264
    %v453 = vsel %vm451, %v438, 0
    %455 = vmatprep.subr.mxu0 0.0
    %456 = vmatpush1.msra.mxu0 %v439
    %457 = vmatprep.subr.mxu0 0.0
    %458 = vmatpush1.msra.mxu0 %v440
    %459 = vmatprep.subr.mxu0 0.0
    %460 = vmatpush1.msra.mxu0 %v441
    %461 = vmatprep.subr.mxu0 0.0
    %462 = vmatpush1.msra.mxu0 %v442
    %463 = vmatprep.subr.mxu0 0.0
    %464 = vmatpush1.msra.mxu0 %v443
    %465 = vmatprep.subr.mxu0 0.0
    %466 = vmatpush1.msra.mxu0 %v444
    %467 = vmatprep.subr.mxu0 0.0
    %468 = vmatpush1.msra.mxu0 %v445
    %469 = vmatprep.subr.mxu0 0.0
    %470 = vmatpush1.msra.mxu0 %v446
    %471 = vmatprep.subr.mxu0 0.0
    %472 = vmatpush1.msra.mxu0 0.0
    %473 = vmatprep.subr.mxu0 0.0
    %474 = vmatpush1.msra.mxu0 0.0
    %475 = vmatprep.subr.mxu0 0.0
    %476 = vmatpush1.msra.mxu0 0.0
    %477 = vmatprep.subr.mxu0 0.0
    %478 = vmatpush1.msra.mxu0 0.0
    %479 = vmatprep.subr.mxu0 0.0
    %480 = vmatpush1.msra.mxu0 0.0
    %481 = vmatprep.subr.mxu0 0.0
    %482 = vmatpush1.msra.mxu0 0.0
    %483 = vmatprep.subr.mxu0 0.0
    %484 = vmatpush1.msra.mxu0 0.0
    %485 = vmatprep.subr.mxu0 0.0
    %486 = vmatpush1.msra.mxu0 0.0
    %487 = vmatprep.subr.mxu0 0.0
    %488 = vmatpush1.msra.mxu0 0.0
    %489 = vmatprep.subr.mxu0 0.0
    %490 = vmatpush1.msra.mxu0 0.0
    %491 = vmatprep.subr.mxu0 0.0
    %492 = vmatpush1.msra.mxu0 0.0
    %493 = vmatprep.subr.mxu0 0.0
    %494 = vmatpush1.msra.mxu0 0.0
    %495 = vmatprep.subr.mxu0 0.0
    %496 = vmatpush1.msra.mxu0 0.0
    %497 = vmatprep.subr.mxu0 0.0
    %498 = vmatpush1.msra.mxu0 0.0
    %499 = vmatprep.subr.mxu0 0.0
    %500 = vmatpush1.msra.mxu0 0.0
    %501 = vmatprep.subr.mxu0 0.0
    %502 = vmatpush1.msra.mxu0 0.0
    %503 = vmatprep.subr.mxu0 0.0
    %504 = vmatpush1.msra.mxu0 0.0
    %505 = vmatprep.subr.mxu0 0.0
    %506 = vmatpush1.msra.mxu0 0.0
    %507 = vmatprep.subr.mxu0 0.0
    %508 = vmatpush1.msra.mxu0 0.0
    %509 = vmatprep.subr.mxu0 0.0
    %510 = vmatpush1.msra.mxu0 0.0
    %511 = vmatprep.subr.mxu0 0.0
    %512 = vmatpush1.msra.mxu0 0.0
    %513 = vmatprep.subr.mxu0 0.0
    %514 = vmatpush1.msra.mxu0 0.0
    %515 = vmatprep.subr.mxu0 0.0
    %516 = vmatpush1.msra.mxu0 0.0
    %517 = vmatprep.subr.mxu0 0.0
    %518 = vmatpush1.msra.mxu0 0.0
    %519 = vmatprep.mubr.f32.mxu0 0.0
    %520 = vmatmul.mubr.f32.gmra.mrb[0].mxu0 %v453
    %v521 = vpop.f32.mrb[0].mxu0
    %v522 = vadd.f32 %v450, %v521
    %v523 = vpop.f32.mrb[0].mxu0
    %524 = vdwg.mxu0
    %v525 = vld [vmem:[%s7] sm:$0xff]
    %v526 = vld [vmem:[%s7 + $0x8] sm:$0xff]
    %v527 = vld [vmem:[%s7 + $0x10] sm:$0xff]
    %v528 = vld [vmem:[%s7 + $0x18] sm:$0xff]
    %v529 = vld [vmem:[%s7 + $0x20] sm:$0xff]
    %v530 = vld [vmem:[%s7 + $0x28] sm:$0xff]
    %v531 = vld [vmem:[%s7 + $0x30] sm:$0xff]
    %v532 = vld [vmem:[%s7 + $0x38] sm:$0xff]
    %v533 = vlaneseq
    %v534 = vshrl.u32 %v533, 7
    %v535 = vsub.s32 0, %v534
    %v536 = vrot.slane %v38, %v535
    %537 = vmatprep.subr.mxu0 0.0
    %538 = vmatpush1.msra.mxu0 %v525
    %539 = vmatprep.subr.mxu0 0.0
    %540 = vmatpush1.msra.mxu0 %v526
    %541 = vmatprep.subr.mxu0 0.0
    %542 = vmatpush1.msra.mxu0 %v527
    %543 = vmatprep.subr.mxu0 0.0
    %544 = vmatpush1.msra.mxu0 %v528
    %545 = vmatprep.subr.mxu0 0.0
    %546 = vmatpush1.msra.mxu0 %v529
    %547 = vmatprep.subr.mxu0 0.0
    %548 = vmatpush1.msra.mxu0 %v530
    %549 = vmatprep.subr.mxu0 0.0
    %550 = vmatpush1.msra.mxu0 %v531
    %551 = vmatprep.subr.mxu0 0.0
    %552 = vmatpush1.msra.mxu0 %v532
    %553 = vmatprep.subr.mxu0 0.0
    %554 = vmatpush1.msra.mxu0 0.0
    %555 = vmatprep.subr.mxu0 0.0
    %556 = vmatpush1.msra.mxu0 0.0
    %557 = vmatprep.subr.mxu0 0.0
    %558 = vmatpush1.msra.mxu0 0.0
    %559 = vmatprep.subr.mxu0 0.0
    %560 = vmatpush1.msra.mxu0 0.0
    %561 = vmatprep.subr.mxu0 0.0
    %562 = vmatpush1.msra.mxu0 0.0
    %563 = vmatprep.subr.mxu0 0.0
    %564 = vmatpush1.msra.mxu0 0.0
    %565 = vmatprep.subr.mxu0 0.0
    %566 = vmatpush1.msra.mxu0 0.0
    %567 = vmatprep.subr.mxu0 0.0
    %568 = vmatpush1.msra.mxu0 0.0
    %569 = vmatprep.subr.mxu0 0.0
    %570 = vmatpush1.msra.mxu0 0.0
    %571 = vmatprep.subr.mxu0 0.0
    %572 = vmatpush1.msra.mxu0 0.0
    %573 = vmatprep.subr.mxu0 0.0
    %574 = vmatpush1.msra.mxu0 0.0
    %575 = vmatprep.subr.mxu0 0.0
    %576 = vmatpush1.msra.mxu0 0.0
    %577 = vmatprep.subr.mxu0 0.0
    %578 = vmatpush1.msra.mxu0 0.0
    %579 = vmatprep.subr.mxu0 0.0
    %580 = vmatpush1.msra.mxu0 0.0
    %581 = vmatprep.subr.mxu0 0.0
    %582 = vmatpush1.msra.mxu0 0.0
    %583 = vmatprep.subr.mxu0 0.0
    %584 = vmatpush1.msra.mxu0 0.0
    %585 = vmatprep.subr.mxu0 0.0
    %586 = vmatpush1.msra.mxu0 0.0
    %587 = vmatprep.subr.mxu0 0.0
    %588 = vmatpush1.msra.mxu0 0.0
    %589 = vmatprep.subr.mxu0 0.0
    %590 = vmatpush1.msra.mxu0 0.0
    %591 = vmatprep.subr.mxu0 0.0
    %592 = vmatpush1.msra.mxu0 0.0
    %593 = vmatprep.subr.mxu0 0.0
    %594 = vmatpush1.msra.mxu0 0.0
    %595 = vmatprep.subr.mxu0 0.0
    %596 = vmatpush1.msra.mxu0 0.0
    %597 = vmatprep.subr.mxu0 0.0
    %598 = vmatpush1.msra.mxu0 0.0
    %599 = vmatprep.subr.mxu0 0.0
    %600 = vmatpush1.msra.mxu0 0.0
    %601 = vmatprep.mubr.f32.mxu0 0.0
    %602 = vmatmul.mubr.f32.gmra.mrb[0].mxu0 %v453
    %v603 = vpop.f32.mrb[0].mxu0
    %v604 = vadd.f32 %v536, %v603
    %v605 = vpop.f32.mrb[0].mxu0
    %606 = vdwg.mxu0
    %vm607 = vcmask 130048
    %608 = vst.msk [vmem:[#allocation2] sm:$0xff] %vm607, %v522
    %609 = vst.msk [vmem:[#allocation4] sm:$0xff] %vm607, %v604
    // Predicated region
    $region38: #{tpu_custom_call.1} parent=1 // pred_check
      _
    $region39: #{tpu_custom_call.1} parent=1 // pred_check_branch
      %611 = sbr.rel (0) target = $region41
    $region40: #{tpu_custom_call.1} parent=1 // pred_region
      %s613 = ssub.s32 128, 128
      %614 = vsyncadd [#allocation3], %s613
      %s616 = sshll.u32 [#allocation2], 4
      %s617 = int_to_ptr.vmem [resolvable:$true] %s616
      %619 = dma.vmem_to_hbm [thread:$0]  %s617, 128, %s9, [#allocation3]
    $region41: #{tpu_custom_call.1} parent=1 // pred_fallthru
      _
    // Predicated region
    $region42: #{tpu_custom_call.1} parent=1 // pred_check
      _
    $region43: #{tpu_custom_call.1} parent=1 // pred_check_branch
      %621 = sbr.rel (0) target = $region45
    $region44: #{tpu_custom_call.1} parent=1 // pred_region
      %s623 = ssub.s32 128, 128
      %624 = vsyncadd [#allocation5], %s623
      %s626 = sshll.u32 [#allocation4], 4
      %s627 = int_to_ptr.vmem [resolvable:$true] %s626
      %629 = dma.vmem_to_hbm [thread:$0]  %s627, 128, %s10, [#allocation5]
    $region45: #{tpu_custom_call.1} parent=1 // pred_fallthru
      _
    // Predicated region
    $region46: #{tpu_custom_call.1} parent=1 // pred_check
      _
    $region47: #{tpu_custom_call.1} parent=1 // pred_check_branch
      %631 = sbr.rel (0) target = $region49
    $region48: #{tpu_custom_call.1} parent=1 // pred_region
      %632 = dma.done [#allocation3], 128
    $region49: #{tpu_custom_call.1} parent=1 // pred_fallthru
      _
    // Predicated region
    $region50: #{tpu_custom_call.1} parent=1 // pred_check
      _
    $region51: #{tpu_custom_call.1} parent=1 // pred_check_branch
      %634 = sbr.rel (0) target = $region53
    $region52: #{tpu_custom_call.1} parent=1 // pred_region
      %635 = dma.done [#allocation5], 128
    $region53: #{tpu_custom_call.1} parent=1 // pred_fallthru
      _
    %636 = vsyncpa [#allocation3], 1
    %637 = vsyncpa [#allocation5], 1

</llo_original>
